<compile_context>
chip_gen: v7x
topology: tpu7x:2x2x1
jax: 0.10.0
libtpu: 0.0.40
codegen_flags: <defaults>
</compile_context>

<pallas_src>
import functools

import jax
import jax.numpy as jnp
from jax import lax
from jax.experimental import pallas as pl
from jax.experimental.pallas import tpu as pltpu


def _dgcnn_kernel(x_ref, adjw_ref, p_ref, o_ref, *, c_in, c_out, block_b):
    # x_ref:    (Bt, C_in, TL)      input activations
    # adjw_ref: (Bt, M, C_out + 1)  precomputed [adj @ W2 | adj @ b2]
    # p_ref:    (C_out, P)          lane-dense packed [w1 | b1 | 0-pad]
    # o_ref:    (Bt, M, TL)
    p = p_ref[...]
    w1 = p[:, :c_in]                                    # (C_out, C_in)
    b1 = p[:, c_in:c_in + 1].astype(jnp.float32)        # (C_out, 1)

    # Small, fully-unrolled batch loop: every matmul is a plain 2-D MXU dot whose
    # minor dim is the lane-dense TL axis -> unmasked vst stores, no relayouts.
    for b in range(block_b):
        x_b = x_ref[b]                                  # (C_in, TL)

        # conv1 (1x1) + ReLU, f32 accumulation.
        h = jnp.dot(w1, x_b, preferred_element_type=jnp.float32)
        h = jnp.maximum(h + b1, 0.0)                    # (C_out, TL) f32

        adjw = adjw_ref[b]                              # (M, C_out + 1)
        a_w = adjw[:, :c_out]                           # (M, C_out)  = adj @ W2
        a_b = adjw[:, c_out:c_out + 1].astype(jnp.float32)  # (M, 1)  = adj @ b2

        # conv2 fused with bmm:  adj @ (W2 h + b2) == (adj W2) h + (adj b2).
        out = jnp.dot(a_w, h.astype(a_w.dtype),
                      preferred_element_type=jnp.float32) + a_b
        o_ref[b] = out.astype(o_ref.dtype)


def dgcnn_layer(x, adj, w1, b1, w2, b2, *, block_b=None, block_l=None,
                compute_dtype=jnp.bfloat16, out_dtype=jnp.float32):
    """Pallas forward of DGCNNLayer.

    x:   (B, C_in, L)      adj: (B, M, C_out)
    w1:  (C_out, C_in)     b1:  (C_out,) or (C_out, 1)
    w2:  (C_out, C_out)    b2:  (C_out,) or (C_out, 1)
    returns (B, M, L) in out_dtype (float32 by default).

    compute_dtype=bfloat16 (default) halves the HBM->VMEM traffic of x / adjW;
    accumulation stays f32.  Use compute_dtype=float32 for bit-tight checking.
    """
    B, C_in, L = x.shape
    Ba, M, C_out = adj.shape
    assert Ba == B
    assert w1.shape == (C_out, C_in)
    assert w2.shape == (C_out, C_out)

    f32 = jnp.float32
    hi = lax.Precision.HIGHEST

    # ---- fold conv2 into the bmm outside the kernel (tiny full-precision einsum)
    w2b = jnp.concatenate(
        [w2.astype(f32), jnp.reshape(b2, (C_out, 1)).astype(f32)], axis=1)
    adjw = jnp.einsum("bmo,oc->bmc", adj.astype(f32), w2b, precision=hi)
    # NOTE: adjW's last dim (C_out+1) is lane-sparse; fine at these sizes.  If M /
    # C_out grow, transpose so the larger axis sits last to keep DMA bytes useful.

    # ---- pack conv1 params into one lane-dense slab (single DMA) ---------------
    cols = C_in + 1
    P = ((cols + 127) // 128) * 128
    params = jnp.zeros((C_out, P), f32)
    params = params.at[:, :C_in].set(w1.astype(f32))
    params = params.at[:, C_in:C_in + 1].set(jnp.reshape(b1, (C_out, 1)).astype(f32))

    x = x.astype(compute_dtype)
    adjw = adjw.astype(compute_dtype)
    params = params.astype(compute_dtype)

    in_bytes = jnp.dtype(compute_dtype).itemsize
    out_bytes = jnp.dtype(out_dtype).itemsize

    # ---- VMEM budget (v7x has 64 MiB physical vs 128 MiB on v5e/v6e) -----------
    try:
        vmem_cap = int(pltpu.get_tpu_info().vmem_capacity_bytes)
    except Exception:
        vmem_cap = 64 << 20              # conservative (v7x-sized) fallback
    budget = int(0.45 * vmem_cap)        # double-buffered tiles must fit w/ headroom

    def tile_bytes(bb, bl):
        x_t = bb * C_in * bl * in_bytes
        adj_t = bb * M * 128 * in_bytes              # last dim lane-padded to 128
        o_t = bb * M * bl * out_bytes
        prm = C_out * P * in_bytes
        interm = (C_out + M) * bl * 4                # f32 h / out before store cast
        return 2 * (x_t + adj_t + o_t + prm) + interm

    # ---- block_b: even, >=2-step parallel batch grid (keeps both v7x TCs busy),
    #      but several examples per step to amortize ~0.35us/step overhead --------
    if block_b is None:
        if B >= 2:
            divs = [d for d in range(1, B // 2 + 1) if B % d == 0 and d <= 8]
            block_b = max(divs) if divs else 1
        else:
            block_b = 1
    pad_b = (-B) % block_b
    if pad_b:
        x = jnp.pad(x, ((0, pad_b), (0, 0), (0, 0)))
        adjw = jnp.pad(adjw, ((0, pad_b), (0, 0), (0, 0)))
    Bp = B + pad_b

    # ---- block_l: largest multiple-of-128 divisor of L within the VMEM budget ---
    if block_l is None:
        if L % 128 == 0:
            cands = [c for c in range(128, L + 1, 128) if L % c == 0]
            fit = [c for c in cands if tile_bytes(block_b, c) <= budget]
            block_l = max(fit) if fit else min(cands)
        else:
            block_l = L                  # block == full dim satisfies the layout rule
    assert L % block_l == 0, "block_l must divide L"

    # If even a lane-minimal L-tile blows the budget, shrink the batch tile.
    while block_b > 1 and tile_bytes(block_b, block_l) > budget:
        block_b = max(d for d in range(1, block_b) if block_b % d == 0)

    fp = tile_bytes(block_b, block_l)
    vmem_limit = int(min(0.9 * vmem_cap, max(2 * fp + (4 << 20), 32 << 20)))

    kernel = functools.partial(_dgcnn_kernel, c_in=C_in, c_out=C_out,
                               block_b=block_b)
    grid = (Bp // block_b, L // block_l)

    out = pl.pallas_call(
        kernel,
        out_shape=jax.ShapeDtypeStruct((Bp, M, L), out_dtype),
        grid_spec=pltpu.PrefetchScalarGridSpec(
            num_scalar_prefetch=0,
            grid=grid,
            in_specs=[
                pl.BlockSpec((block_b, C_in, block_l), lambda b, l: (b, 0, l)),
                pl.BlockSpec((block_b, M, C_out + 1), lambda b, l: (b, 0, 0)),
                pl.BlockSpec((C_out, P), lambda b, l: (0, 0)),
            ],
            out_specs=pl.BlockSpec((block_b, M, block_l), lambda b, l: (b, 0, l)),
        ),
        compiler_params=pltpu.CompilerParams(
            dimension_semantics=("parallel", "parallel"),
            vmem_limit_bytes=vmem_limit),
    )(x, adjw, params)

    if pad_b:
        out = out[:B]
    return out


def dgcnn_layer_ref(x, adj, w1, b1, w2, b2):
    # Pure-JAX reference of the PyTorch forward (full f32 precision).
    hi = lax.Precision.HIGHEST
    b1 = jnp.reshape(b1, (-1, 1))
    b2 = jnp.reshape(b2, (-1, 1))
    h = jnp.maximum(jnp.einsum("oc,bcl->bol", w1, x, precision=hi) + b1[None], 0.0)
    y = jnp.einsum("oc,bcl->bol", w2, h, precision=hi) + b2[None]
    return jnp.einsum("bmo,bol->bml", adj, y, precision=hi)


if __name__ == "__main__":
    B, C_in, C_out, L = 8, 8, 16, 256
    M = C_out  # adj is (B, M, C_out)

    key = jax.random.PRNGKey(0)
    kx, kadj, kw1, kb1, kw2, kb2 = jax.random.split(key, 6)

    x = jax.random.normal(kx, (B, C_in, L), dtype=jnp.float32)
    adj = jax.random.normal(kadj, (B, M, C_out), dtype=jnp.float32)

    # PyTorch-style uniform init bounds for Conv1d with kernel_size=1.
    bound1 = 1.0 / (C_in ** 0.5)
    bound2 = 1.0 / (C_out ** 0.5)
    w1 = jax.random.uniform(kw1, (C_out, C_in), jnp.float32, -bound1, bound1)
    b1 = jax.random.uniform(kb1, (C_out, 1), jnp.float32, -bound1, bound1)
    w2 = jax.random.uniform(kw2, (C_out, C_out), jnp.float32, -bound2, bound2)
    b2 = jax.random.uniform(kb2, (C_out, 1), jnp.float32, -bound2, bound2)

    ref = dgcnn_layer_ref(x, adj, w1, b1, w2, b2)

    # f32 compute path: tight correctness check against the PyTorch-equivalent ref.
    out_f32 = jax.block_until_ready(
        dgcnn_layer(x, adj, w1, b1, w2, b2, compute_dtype=jnp.float32))
    assert out_f32.shape == (B, M, L)
    assert jnp.allclose(out_f32, ref, atol=1e-4, rtol=1e-4)

    # Default bf16-input path (halves input DMA; f32 accumulation kept).  Expected
    # precision loss comes only from the input casts -> loose relative-norm check.
    out_bf16 = jax.block_until_ready(dgcnn_layer(x, adj, w1, b1, w2, b2))
    assert out_bf16.shape == (B, M, L)
    rel = (jnp.linalg.norm((out_bf16 - ref).astype(jnp.float32))
           / jnp.linalg.norm(ref))
    assert rel < 5e-2

    print("KERNEL_OK")
</pallas_src>

<mosaic_0001>
module attributes {stable_mosaic.version = 11 : i64} {
  func.func @_dgcnn_kernel(%arg0: i32, %arg1: i32, %arg2: memref<4x8x256xf32, #tpu.memory_space<vmem>>, %arg3: memref<4x16x17xf32, #tpu.memory_space<vmem>>, %arg4: memref<16x128xf32, #tpu.memory_space<vmem>>, %arg5: memref<4x16x256xf32, #tpu.memory_space<vmem>>) attributes {dimension_semantics = [#tpu.dimension_semantics<parallel>, #tpu.dimension_semantics<parallel>], iteration_bounds = array<i64: 2, 1>, scalar_prefetch = 0 : i64, scratch_operands = 0 : i64, tpu.core_type = #tpu.core_type<tc>, window_params = [{transform_indices = @transform_0, window_bounds = array<i64: 4, 8, 256>}, {transform_indices = @transform_1, window_bounds = array<i64: 4, 16, 17>}, {pipeline_mode = #tpu.pipeline_mode<synchronous>, transform_indices = @transform_2, window_bounds = array<i64: 16, 128>}, {transform_indices = @transform_3, window_bounds = array<i64: 4, 16, 256>}]} {
    %c0 = arith.constant 0 : index
    %c0_0 = arith.constant 0 : index
    %0 = vector.load %arg4[%c0, %c0_0] : memref<16x128xf32, #tpu.memory_space<vmem>>, vector<16x128xf32>
    %1 = vector.extract_strided_slice %0 {offsets = [0, 0], sizes = [16, 8], strides = [1, 1]} : vector<16x128xf32> to vector<16x8xf32>
    %2 = vector.extract_strided_slice %0 {offsets = [0, 8], sizes = [16, 1], strides = [1, 1]} : vector<16x128xf32> to vector<16x1xf32>
    %c0_1 = arith.constant 0 : index
    %c0_2 = arith.constant 0 : index
    %c0_3 = arith.constant 0 : index
    %3 = vector.load %arg2[%c0_1, %c0_2, %c0_3] : memref<4x8x256xf32, #tpu.memory_space<vmem>>, vector<1x8x256xf32>
    %4 = vector.shape_cast %3 : vector<1x8x256xf32> to vector<8x256xf32>
    %cst = arith.constant dense<0.000000e+00> : vector<16x256xf32>
    %5 = tpu.matmul %1, %4, %cst {dimension_numbers = #tpu.dot_dimension_numbers<[1], [0], [0], [1], [0, 0, 1, 1], [], []>} : vector<16x8xf32>, vector<8x256xf32>, vector<16x256xf32> -> vector<16x256xf32>
    %6 = vector.broadcast %2 : vector<16x1xf32> to vector<16x256xf32>
    %7 = arith.addf %5, %6 : vector<16x256xf32>
    %cst_4 = arith.constant 0.000000e+00 : f32
    %8 = vector.broadcast %cst_4 : f32 to vector<16x256xf32>
    %9 = arith.maximumf %7, %8 : vector<16x256xf32>
    %c0_5 = arith.constant 0 : index
    %c0_6 = arith.constant 0 : index
    %c0_7 = arith.constant 0 : index
    %10 = vector.load %arg3[%c0_5, %c0_6, %c0_7] : memref<4x16x17xf32, #tpu.memory_space<vmem>>, vector<1x16x17xf32>
    %11 = vector.shape_cast %10 : vector<1x16x17xf32> to vector<16x17xf32>
    %12 = vector.extract_strided_slice %11 {offsets = [0, 0], sizes = [16, 16], strides = [1, 1]} : vector<16x17xf32> to vector<16x16xf32>
    %13 = vector.extract_strided_slice %11 {offsets = [0, 16], sizes = [16, 1], strides = [1, 1]} : vector<16x17xf32> to vector<16x1xf32>
    %cst_8 = arith.constant dense<0.000000e+00> : vector<16x256xf32>
    %14 = tpu.matmul %12, %9, %cst_8 {dimension_numbers = #tpu.dot_dimension_numbers<[1], [0], [0], [1], [0, 0, 1, 1], [], []>} : vector<16x16xf32>, vector<16x256xf32>, vector<16x256xf32> -> vector<16x256xf32>
    %15 = vector.broadcast %13 : vector<16x1xf32> to vector<16x256xf32>
    %16 = arith.addf %14, %15 : vector<16x256xf32>
    %c0_9 = arith.constant 0 : index
    %c0_10 = arith.constant 0 : index
    %c0_11 = arith.constant 0 : index
    %17 = vector.load %arg5[%c0_9, %c0_10, %c0_11] : memref<4x16x256xf32, #tpu.memory_space<vmem>>, vector<1x16x256xf32>
    %18 = vector.shape_cast %17 : vector<1x16x256xf32> to vector<16x256xf32>
    %19 = vector.shape_cast %16 : vector<16x256xf32> to vector<1x16x256xf32>
    tpu.vector_store %arg5[%c0_9, %c0_10, %c0_11], %19 {strides = array<i32>} : memref<4x16x256xf32, #tpu.memory_space<vmem>>, vector<1x16x256xf32>,
    %c1 = arith.constant 1 : index
    %c0_12 = arith.constant 0 : index
    %c0_13 = arith.constant 0 : index
    %20 = vector.load %arg2[%c1, %c0_12, %c0_13] : memref<4x8x256xf32, #tpu.memory_space<vmem>>, vector<1x8x256xf32>
    %21 = vector.shape_cast %20 : vector<1x8x256xf32> to vector<8x256xf32>
    %cst_14 = arith.constant dense<0.000000e+00> : vector<16x256xf32>
    %22 = tpu.matmul %1, %21, %cst_14 {dimension_numbers = #tpu.dot_dimension_numbers<[1], [0], [0], [1], [0, 0, 1, 1], [], []>} : vector<16x8xf32>, vector<8x256xf32>, vector<16x256xf32> -> vector<16x256xf32>
    %23 = vector.broadcast %2 : vector<16x1xf32> to vector<16x256xf32>
    %24 = arith.addf %22, %23 : vector<16x256xf32>
    %cst_15 = arith.constant 0.000000e+00 : f32
    %25 = vector.broadcast %cst_15 : f32 to vector<16x256xf32>
    %26 = arith.maximumf %24, %25 : vector<16x256xf32>
    %c1_16 = arith.constant 1 : index
    %c0_17 = arith.constant 0 : index
    %c0_18 = arith.constant 0 : index
    %27 = vector.load %arg3[%c1_16, %c0_17, %c0_18] : memref<4x16x17xf32, #tpu.memory_space<vmem>>, vector<1x16x17xf32>
    %28 = vector.shape_cast %27 : vector<1x16x17xf32> to vector<16x17xf32>
    %29 = vector.extract_strided_slice %28 {offsets = [0, 0], sizes = [16, 16], strides = [1, 1]} : vector<16x17xf32> to vector<16x16xf32>
    %30 = vector.extract_strided_slice %28 {offsets = [0, 16], sizes = [16, 1], strides = [1, 1]} : vector<16x17xf32> to vector<16x1xf32>
    %cst_19 = arith.constant dense<0.000000e+00> : vector<16x256xf32>
    %31 = tpu.matmul %29, %26, %cst_19 {dimension_numbers = #tpu.dot_dimension_numbers<[1], [0], [0], [1], [0, 0, 1, 1], [], []>} : vector<16x16xf32>, vector<16x256xf32>, vector<16x256xf32> -> vector<16x256xf32>
    %32 = vector.broadcast %30 : vector<16x1xf32> to vector<16x256xf32>
    %33 = arith.addf %31, %32 : vector<16x256xf32>
    %c1_20 = arith.constant 1 : index
    %c0_21 = arith.constant 0 : index
    %c0_22 = arith.constant 0 : index
    %34 = vector.load %arg5[%c1_20, %c0_21, %c0_22] : memref<4x16x256xf32, #tpu.memory_space<vmem>>, vector<1x16x256xf32>
    %35 = vector.shape_cast %34 : vector<1x16x256xf32> to vector<16x256xf32>
    %36 = vector.shape_cast %33 : vector<16x256xf32> to vector<1x16x256xf32>
    tpu.vector_store %arg5[%c1_20, %c0_21, %c0_22], %36 {strides = array<i32>} : memref<4x16x256xf32, #tpu.memory_space<vmem>>, vector<1x16x256xf32>,
    %c2 = arith.constant 2 : index
    %c0_23 = arith.constant 0 : index
    %c0_24 = arith.constant 0 : index
    %37 = vector.load %arg2[%c2, %c0_23, %c0_24] : memref<4x8x256xf32, #tpu.memory_space<vmem>>, vector<1x8x256xf32>
    %38 = vector.shape_cast %37 : vector<1x8x256xf32> to vector<8x256xf32>
    %cst_25 = arith.constant dense<0.000000e+00> : vector<16x256xf32>
    %39 = tpu.matmul %1, %38, %cst_25 {dimension_numbers = #tpu.dot_dimension_numbers<[1], [0], [0], [1], [0, 0, 1, 1], [], []>} : vector<16x8xf32>, vector<8x256xf32>, vector<16x256xf32> -> vector<16x256xf32>
    %40 = vector.broadcast %2 : vector<16x1xf32> to vector<16x256xf32>
    %41 = arith.addf %39, %40 : vector<16x256xf32>
    %cst_26 = arith.constant 0.000000e+00 : f32
    %42 = vector.broadcast %cst_26 : f32 to vector<16x256xf32>
    %43 = arith.maximumf %41, %42 : vector<16x256xf32>
    %c2_27 = arith.constant 2 : index
    %c0_28 = arith.constant 0 : index
    %c0_29 = arith.constant 0 : index
    %44 = vector.load %arg3[%c2_27, %c0_28, %c0_29] : memref<4x16x17xf32, #tpu.memory_space<vmem>>, vector<1x16x17xf32>
    %45 = vector.shape_cast %44 : vector<1x16x17xf32> to vector<16x17xf32>
    %46 = vector.extract_strided_slice %45 {offsets = [0, 0], sizes = [16, 16], strides = [1, 1]} : vector<16x17xf32> to vector<16x16xf32>
    %47 = vector.extract_strided_slice %45 {offsets = [0, 16], sizes = [16, 1], strides = [1, 1]} : vector<16x17xf32> to vector<16x1xf32>
    %cst_30 = arith.constant dense<0.000000e+00> : vector<16x256xf32>
    %48 = tpu.matmul %46, %43, %cst_30 {dimension_numbers = #tpu.dot_dimension_numbers<[1], [0], [0], [1], [0, 0, 1, 1], [], []>} : vector<16x16xf32>, vector<16x256xf32>, vector<16x256xf32> -> vector<16x256xf32>
    %49 = vector.broadcast %47 : vector<16x1xf32> to vector<16x256xf32>
    %50 = arith.addf %48, %49 : vector<16x256xf32>
    %c2_31 = arith.constant 2 : index
    %c0_32 = arith.constant 0 : index
    %c0_33 = arith.constant 0 : index
    %51 = vector.load %arg5[%c2_31, %c0_32, %c0_33] : memref<4x16x256xf32, #tpu.memory_space<vmem>>, vector<1x16x256xf32>
    %52 = vector.shape_cast %51 : vector<1x16x256xf32> to vector<16x256xf32>
    %53 = vector.shape_cast %50 : vector<16x256xf32> to vector<1x16x256xf32>
    tpu.vector_store %arg5[%c2_31, %c0_32, %c0_33], %53 {strides = array<i32>} : memref<4x16x256xf32, #tpu.memory_space<vmem>>, vector<1x16x256xf32>,
    %c3 = arith.constant 3 : index
    %c0_34 = arith.constant 0 : index
    %c0_35 = arith.constant 0 : index
    %54 = vector.load %arg2[%c3, %c0_34, %c0_35] : memref<4x8x256xf32, #tpu.memory_space<vmem>>, vector<1x8x256xf32>
    %55 = vector.shape_cast %54 : vector<1x8x256xf32> to vector<8x256xf32>
    %cst_36 = arith.constant dense<0.000000e+00> : vector<16x256xf32>
    %56 = tpu.matmul %1, %55, %cst_36 {dimension_numbers = #tpu.dot_dimension_numbers<[1], [0], [0], [1], [0, 0, 1, 1], [], []>} : vector<16x8xf32>, vector<8x256xf32>, vector<16x256xf32> -> vector<16x256xf32>
    %57 = vector.broadcast %2 : vector<16x1xf32> to vector<16x256xf32>
    %58 = arith.addf %56, %57 : vector<16x256xf32>
    %cst_37 = arith.constant 0.000000e+00 : f32
    %59 = vector.broadcast %cst_37 : f32 to vector<16x256xf32>
    %60 = arith.maximumf %58, %59 : vector<16x256xf32>
    %c3_38 = arith.constant 3 : index
    %c0_39 = arith.constant 0 : index
    %c0_40 = arith.constant 0 : index
    %61 = vector.load %arg3[%c3_38, %c0_39, %c0_40] : memref<4x16x17xf32, #tpu.memory_space<vmem>>, vector<1x16x17xf32>
    %62 = vector.shape_cast %61 : vector<1x16x17xf32> to vector<16x17xf32>
    %63 = vector.extract_strided_slice %62 {offsets = [0, 0], sizes = [16, 16], strides = [1, 1]} : vector<16x17xf32> to vector<16x16xf32>
    %64 = vector.extract_strided_slice %62 {offsets = [0, 16], sizes = [16, 1], strides = [1, 1]} : vector<16x17xf32> to vector<16x1xf32>
    %cst_41 = arith.constant dense<0.000000e+00> : vector<16x256xf32>
    %65 = tpu.matmul %63, %60, %cst_41 {dimension_numbers = #tpu.dot_dimension_numbers<[1], [0], [0], [1], [0, 0, 1, 1], [], []>} : vector<16x16xf32>, vector<16x256xf32>, vector<16x256xf32> -> vector<16x256xf32>
    %66 = vector.broadcast %64 : vector<16x1xf32> to vector<16x256xf32>
    %67 = arith.addf %65, %66 : vector<16x256xf32>
    %c3_42 = arith.constant 3 : index
    %c0_43 = arith.constant 0 : index
    %c0_44 = arith.constant 0 : index
    %68 = vector.load %arg5[%c3_42, %c0_43, %c0_44] : memref<4x16x256xf32, #tpu.memory_space<vmem>>, vector<1x16x256xf32>
    %69 = vector.shape_cast %68 : vector<1x16x256xf32> to vector<16x256xf32>
    %70 = vector.shape_cast %67 : vector<16x256xf32> to vector<1x16x256xf32>
    tpu.vector_store %arg5[%c3_42, %c0_43, %c0_44], %70 {strides = array<i32>} : memref<4x16x256xf32, #tpu.memory_space<vmem>>, vector<1x16x256xf32>,
    return
  }
  func.func @transform_0(%arg0: i32, %arg1: i32) -> (i32, i32, i32) {
    %c0_i32 = arith.constant 0 : i32
    %c0_i32_0 = arith.constant 0 : i32
    return %arg0, %c0_i32, %arg1 : i32, i32, i32
  }
  func.func @transform_1(%arg0: i32, %arg1: i32) -> (i32, i32, i32) {
    %c0_i32 = arith.constant 0 : i32
    %c0_i32_0 = arith.constant 0 : i32
    %c0_i32_1 = arith.constant 0 : i32
    return %arg0, %c0_i32, %c0_i32_0 : i32, i32, i32
  }
  func.func @transform_2(%arg0: i32, %arg1: i32) -> (i32, i32) {
    %c0_i32 = arith.constant 0 : i32
    %c0_i32_0 = arith.constant 0 : i32
    %c0_i32_1 = arith.constant 0 : i32
    return %c0_i32, %c0_i32_0 : i32, i32
  }
  func.func @transform_3(%arg0: i32, %arg1: i32) -> (i32, i32, i32) {
    %c0_i32 = arith.constant 0 : i32
    %c0_i32_0 = arith.constant 0 : i32
    return %arg0, %c0_i32, %arg1 : i32, i32, i32
  }
}

</mosaic_0001>

<llo_original>
// kernel: tpu_custom_call.1
$region0: #{tpu_custom_call.1}
  #allocation0 [shape = 'u32[]', space=smem, size = 0x4, offset = 0x4, fixed_abs, tag = 'smem constant byte address 0x4 - core index']
  #allocation1 [shape = 'u32[144,128]{1,0:T(1,128)}', space=vmem, size = 0x12000, scoped, tag = 'internal scratch']
  %s0 = inlined_call_operand.hbm [shape: f32[8,8,256], index: 0, kind: input, shape index: {}]
  %s1 = inlined_call_operand.hbm [shape: f32[8,16,17], index: 1, kind: input, shape index: {}]
  %s2 = inlined_call_operand.hbm [shape: f32[16,128], index: 2, kind: input, shape index: {}]
  %s3 = inlined_call_operand.hbm [shape: f32[8,16,256], index: 3, kind: output, shape index: {}]
  %s4 = sld [smem:[#allocation0]]
  $region57: #{tpu_custom_call.1} parent=0
    _
  %s6 = ssub.s32 1, %s4
  %s7 = scalar_select 0, %s6, %s4
  $region1: #{tpu_custom_call.1} parent=0
    #allocation2 [shape = 'u8[65536]{0}', space=vmem, size = 0x10000, scoped, tag = 'input window, operand 0']
    #allocation3 [shape = 's32[2]{0}', space=sflag, size = 0x8, scoped, tag = 'scoped memory for tpu_custom_call.1']
    #allocation4 [shape = 's32[2]{0}', space=sflag, size = 0x8, scoped, tag = 'scoped memory for tpu_custom_call.1']
    #allocation5 [shape = 'u8[65536]{0}', space=vmem, size = 0x10000, scoped, tag = 'input window, operand 1']
    #allocation6 [shape = 's32[2]{0}', space=sflag, size = 0x8, scoped, tag = 'scoped memory for tpu_custom_call.1']
    #allocation7 [shape = 'u8[8192]{0}', space=vmem, size = 0x2000, scoped, tag = 'input window, operand 2, single buffered']
    #allocation8 [shape = 'u8[131072]{0}', space=vmem, size = 0x20000, scoped, tag = 'output window, operand 0']
    %8 = vsyncpa [#allocation3], 0
    %s9 = scalar_lea.sflag [#allocation3], 1
    %10 = vsyncpa %s9, 0
    %11 = vsyncpa [#allocation6], 0
    %s12 = scalar_lea.sflag [#allocation6], 1
    %13 = vsyncpa %s12, 0
    %14 = vsyncpa [#allocation4], 0
    %s15 = scalar_lea.sflag [#allocation4], 1
    %16 = vsyncpa %s15, 0
    loop: start=0, step=1, limit=4
    $region2: #{tpu_custom_call.1} parent=1 // loop_pre_header
      _
    $region3: #{tpu_custom_call.1} parent=1 // loop_header
      %s18 = sphi 0, %s22
      %p19 = scmp.ge.s32.totalorder %s18, 4
      %s25 = sphi 0, %s37
      %s26 = sphi 0, %s33
      %s27 = sphi 0, %s25
      %s28 = sphi 0, %s26
      %s29 = sphi 0, %s27
      %s30 = sphi 0, %s28
      %s42 = sphi 0, %s44
      %s45 = sphi 0, %s42
      %s46 = sphi 0, %s45
      %s62 = sphi 0, %s46
      %s68 = sphi 0, %s70
      %s71 = sphi 0, %s68
      %s72 = sphi 0, %s71
      %s88 = sphi 0, %s72
      %s92 = sphi 0, %s92
      %s94 = sphi 0, %s92
      %s95 = sphi 0, %s94
      %s109 = sphi 0, %s95
      %s117 = sphi 0, %s119
      %s120 = sphi 0, %s117
      %s121 = sphi 0, %s120
      %s137 = sphi 0, %s121
    $region4: #{tpu_custom_call.1} parent=1 // loop_header_branch
      %21 = sbr.rel (%p19) target = $region8
    $region5: #{tpu_custom_call.1} parent=1 // loop_body
      %s23 = ssub.s32 %s18, 1
      %s24 = ssub.s32 %s18, 2
      %s31 = sadd.s32 1, %s26
      %p32 = scmp.ge.s32.totalorder %s31, 1
      %s33 = scalar_select %p32, 0, %s31
      %s34 = sadd.s32 1, %s25
      %s35 = scalar_select %p32, %s34, %s25
      %p36 = scmp.ge.s32.totalorder %s35, 2
      %s37 = scalar_select %p36, 0, %s35
      %s38 = ssub.s32 %s25, %s37
      %s39 = ssub.s32 %s26, %s33
      %s40 = sor.u32 %s38, %s39
      %p41 = scmp.eq.s32.totalorder %s40, 0
      %s43 = sadd.s32 %s42, 1
      %s44 = scalar_select %p41, %s42, %s43
      %p47 = pneg %p41
      %p48 = scmp.eq.s32.totalorder %s18, 1
      %p49 = por %p47, %p48
      %p50 = scmp.ne.s32.totalorder %s42, %s45
      %p51 = scmp.eq.s32.totalorder %s18, 0
      %p52 = por %p50, %p51
      %p53 = scmp.ne.s32.totalorder %s42, %s45
      %p54 = scmp.eq.s32.totalorder %s23, 1
      %p55 = por %p53, %p54
      %p56 = scmp.ne.s32.totalorder %s45, %s46
      %p57 = scmp.eq.s32.totalorder %s23, 0
      %p58 = por %p56, %p57
      %p59 = scmp.ne.s32.totalorder %s45, %s46
      %p60 = scmp.eq.s32.totalorder %s24, 1
      %p61 = por %p59, %p60
      %p63 = scmp.ne.s32.totalorder %s46, %s62
      %p64 = scmp.eq.s32.totalorder %s24, 0
      %p65 = por %p63, %p64
      %s66 = ssub.s32 %s25, %s37
      %p67 = scmp.eq.s32.totalorder %s66, 0
      %s69 = sadd.s32 %s68, 1
      %s70 = scalar_select %p67, %s68, %s69
      %p73 = pneg %p67
      %p74 = scmp.eq.s32.totalorder %s18, 1
      %p75 = por %p73, %p74
      %p76 = scmp.ne.s32.totalorder %s68, %s71
      %p77 = scmp.eq.s32.totalorder %s18, 0
      %p78 = por %p76, %p77
      %p79 = scmp.ne.s32.totalorder %s68, %s71
      %p80 = scmp.eq.s32.totalorder %s23, 1
      %p81 = por %p79, %p80
      %p82 = scmp.ne.s32.totalorder %s71, %s72
      %p83 = scmp.eq.s32.totalorder %s23, 0
      %p84 = por %p82, %p83
      %p85 = scmp.ne.s32.totalorder %s71, %s72
      %p86 = scmp.eq.s32.totalorder %s24, 1
      %p87 = por %p85, %p86
      %p89 = scmp.ne.s32.totalorder %s72, %s88
      %p90 = scmp.eq.s32.totalorder %s24, 0
      %p91 = por %p89, %p90
      %s93 = sadd.s32 %s92, 1
      %p96 = scmp.eq.s32.totalorder %s18, 1
      %p97 = scmp.ne.s32.totalorder %s92, %s94
      %p98 = scmp.eq.s32.totalorder %s18, 0
      %p99 = por %p97, %p98
      %p100 = scmp.ne.s32.totalorder %s92, %s94
      %p101 = scmp.eq.s32.totalorder %s23, 1
      %p102 = por %p100, %p101
      %p103 = scmp.ne.s32.totalorder %s94, %s95
      %p104 = scmp.eq.s32.totalorder %s23, 0
      %p105 = por %p103, %p104
      %p106 = scmp.ne.s32.totalorder %s94, %s95
      %p107 = scmp.eq.s32.totalorder %s24, 1
      %p108 = por %p106, %p107
      %p110 = scmp.ne.s32.totalorder %s95, %s109
      %p111 = scmp.eq.s32.totalorder %s24, 0
      %p112 = por %p110, %p111
      %s113 = ssub.s32 %s25, %s37
      %s114 = ssub.s32 %s26, %s33
      %s115 = sor.u32 %s113, %s114
      %p116 = scmp.eq.s32.totalorder %s115, 0
      %s118 = sadd.s32 %s117, 1
      %s119 = scalar_select %p116, %s117, %s118
      %p122 = pneg %p116
      %p123 = scmp.eq.s32.totalorder %s18, 1
      %p124 = por %p122, %p123
      %p125 = scmp.ne.s32.totalorder %s117, %s120
      %p126 = scmp.eq.s32.totalorder %s18, 0
      %p127 = por %p125, %p126
      %p128 = scmp.ne.s32.totalorder %s117, %s120
      %p129 = scmp.eq.s32.totalorder %s23, 1
      %p130 = por %p128, %p129
      %p131 = scmp.ne.s32.totalorder %s120, %s121
      %p132 = scmp.eq.s32.totalorder %s23, 0
      %p133 = por %p131, %p132
      %p134 = scmp.ne.s32.totalorder %s120, %s121
      %p135 = scmp.eq.s32.totalorder %s24, 1
      %p136 = por %p134, %p135
      %p138 = scmp.ne.s32.totalorder %s121, %s137
      %p139 = scmp.eq.s32.totalorder %s24, 0
      %p140 = por %p138, %p139
      %p141 = scmp.le.s32.totalorder 1, %s18
      %p142 = scmp.lt.s32.totalorder %s18, 3
      %p143 = pnand %p141, %p142
      %p144 = pneg %p143
      // Predicated region
      $region9: #{tpu_custom_call.1} parent=5 // pred_check
        _
      $region10: #{tpu_custom_call.1} parent=5 // pred_check_branch
        %146 = sbr.rel (%p143) target = $region12
      $region11: #{tpu_custom_call.1} parent=5 // pred_region
        %s147 = ssub.s32 %s18, 1
        // Predicated region
        $region13: #{tpu_custom_call.1} parent=11 // pred_check
          %p148 = pneg %p105
        $region14: #{tpu_custom_call.1} parent=11 // pred_check_branch
          %150 = sbr.rel (%p148) target = $region16
        $region15: #{tpu_custom_call.1} parent=11 // pred_region
          %s152 = ssub.s32 256, 256
          %153 = vsyncadd [#allocation6], %s152
          %s154 = sshll.u32 [#allocation7], 4
          %s155 = int_to_ptr.vmem [resolvable:$true] %s154
          %160 = dma.hbm_to_vmem [thread:$0]  %s2, 256, %s155, [#allocation6], 128, 128, 8
        $region16: #{tpu_custom_call.1} parent=11 // pred_fallthru
          _
      $region12: #{tpu_custom_call.1} parent=5 // pred_fallthru
        _
      %p161 = scmp.lt.s32.totalorder %s18, 2
      // Predicated region
      $region17: #{tpu_custom_call.1} parent=5 // pred_check
        %p162 = pneg %p161
      $region18: #{tpu_custom_call.1} parent=5 // pred_check_branch
        %164 = sbr.rel (%p162) target = $region20
      $region19: #{tpu_custom_call.1} parent=5 // pred_region
        // Predicated region
        $region21: #{tpu_custom_call.1} parent=19 // pred_check
          %p165 = pneg %p52
        $region22: #{tpu_custom_call.1} parent=19 // pred_check_branch
          %167 = sbr.rel (%p165) target = $region24
        $region23: #{tpu_custom_call.1} parent=19 // pred_region
          %s168 = sand.u32 %s42, 1
          %s169 = scalar_lea.sflag [#allocation3], %s168
          %s170 = sand.u32 %s42, 1
          %s171 = smul.addr %s170, 64
          %s172 = scalar_lea.vmem [#allocation2], %s171
          %s173 = smul.u32 4, %s25
          %s174 = smul.u32 2, %s26
          %s176 = ssub.s32 1024, 1024
          %177 = vsyncadd %s169, %s176
          %s178 = smul.addr %s173, 2
          %s179 = sadd.s32 %s174, %s178
          %s180 = smul.addr %s179, 128
          %s181 = scalar_lea.hbm %s0, %s180
          %s182 = sshll.u32 %s172, 4
          %s183 = int_to_ptr.vmem [resolvable:$true] %s182
          %188 = dma.hbm_to_vmem [thread:$0]  %s181, 1024, %s183, %s169, 256, 256, 16
        $region24: #{tpu_custom_call.1} parent=19 // pred_fallthru
          _
        // Predicated region
        $region25: #{tpu_custom_call.1} parent=19 // pred_check
          %p189 = pneg %p78
        $region26: #{tpu_custom_call.1} parent=19 // pred_check_branch
          %191 = sbr.rel (%p189) target = $region28
        $region27: #{tpu_custom_call.1} parent=19 // pred_region
          %s192 = sand.u32 %s18, 1
          %s193 = scalar_lea.sflag [#allocation6], %s192
          %s194 = sand.u32 %s68, 1
          %s195 = smul.addr %s194, 64
          %s196 = scalar_lea.vmem [#allocation5], %s195
          %s197 = smul.u32 4, %s25
          %s199 = ssub.s32 1024, 1024
          %200 = vsyncadd %s193, %s199
          %s201 = smul.addr %s197, 2
          %s202 = smul.addr %s201, 128
          %s203 = scalar_lea.hbm %s1, %s202
          %s204 = sshll.u32 %s196, 4
          %s205 = int_to_ptr.vmem [resolvable:$true] %s204
          %210 = dma.hbm_to_vmem [thread:$0]  %s203, 1024, %s205, %s193, 128, 128, 8
        $region28: #{tpu_custom_call.1} parent=19 // pred_fallthru
          _
      $region20: #{tpu_custom_call.1} parent=5 // pred_fallthru
        _
      %p211 = scmp.le.s32.totalorder 1, %s18
      %p212 = scmp.lt.s32.totalorder %s18, 3
      %p213 = pnand %p211, %p212
      %p214 = pneg %p213
      // Predicated region
      $region29: #{tpu_custom_call.1} parent=5 // pred_check
        _
      $region30: #{tpu_custom_call.1} parent=5 // pred_check_branch
        %216 = sbr.rel (%p213) target = $region32
      $region31: #{tpu_custom_call.1} parent=5 // pred_region
        %s217 = ssub.s32 %s18, 1
        %s218 = sand.u32 %s45, 1
        %s219 = scalar_lea.sflag [#allocation3], %s218
        %s220 = sand.u32 %s45, 1
        %s221 = smul.addr %s220, 64
        %s222 = scalar_lea.vmem [#allocation2], %s221
        // Predicated region
        $region33: #{tpu_custom_call.1} parent=31 // pred_check
          %p223 = pneg %p58
        $region34: #{tpu_custom_call.1} parent=31 // pred_check_branch
          %225 = sbr.rel (%p223) target = $region36
        $region35: #{tpu_custom_call.1} parent=31 // pred_region
          %226 = dma.done %s219, 1024
        $region36: #{tpu_custom_call.1} parent=31 // pred_fallthru
          _
        %s227 = sand.u32 %s23, 1
        %s228 = scalar_lea.sflag [#allocation6], %s227
        %s229 = sand.u32 %s71, 1
        %s230 = smul.addr %s229, 64
        %s231 = scalar_lea.vmem [#allocation5], %s230
        // Predicated region
        $region37: #{tpu_custom_call.1} parent=31 // pred_check
          %p232 = pneg %p84
        $region38: #{tpu_custom_call.1} parent=31 // pred_check_branch
          %234 = sbr.rel (%p232) target = $region40
        $region39: #{tpu_custom_call.1} parent=31 // pred_region
          %235 = dma.done %s228, 1024
        $region40: #{tpu_custom_call.1} parent=31 // pred_fallthru
          _
        // Predicated region
        $region41: #{tpu_custom_call.1} parent=31 // pred_check
          %p236 = pneg %p105
        $region42: #{tpu_custom_call.1} parent=31 // pred_check_branch
          %238 = sbr.rel (%p236) target = $region44
        $region43: #{tpu_custom_call.1} parent=31 // pred_region
          %239 = dma.done [#allocation6], 256
        $region44: #{tpu_custom_call.1} parent=31 // pred_fallthru
          _
        %s240 = sand.u32 %s45, 1
        %s241 = scalar_lea.sflag [#allocation3], %s240
        %s242 = sand.u32 %s45, 1
        %s243 = smul.addr %s242, 64
        %s244 = scalar_lea.vmem [#allocation2], %s243
        %p245 = pneg %p58
        %p246 = pneg %p55
        %s247 = sand.u32 %s23, 1
        %s248 = scalar_lea.sflag [#allocation6], %s247
        %s249 = sand.u32 %s71, 1
        %s250 = smul.addr %s249, 64
        %s251 = scalar_lea.vmem [#allocation5], %s250
        %p252 = pneg %p84
        %p253 = pneg %p81
        %p254 = pneg %p105
        %p255 = pneg %p102
        %p256 = pneg %p133
        %p257 = pneg %p130
        %s258 = sand.u32 %s120, 1
        %s259 = scalar_lea.sflag [#allocation4], %s258
        %s260 = sand.u32 %s120, 1
        %s261 = smul.addr %s260, 128
        %s262 = scalar_lea.vmem [#allocation8], %s261
        %s263 = smul.u32 4, %s27
        %s264 = smul.u32 2, %s28
        %s265 = smul.u32 4, %s27
        %s266 = smul.u32 4, %s27
        %s267 = smul.u32 2, %s28
        %v268 = vld [vmem:[#allocation7] sm:$0xff]
        %v269 = vld [vmem:[#allocation7 + $0x8] sm:$0xff]
        %v270 = vld [vmem:[%s222] sm:$0xff]
        %v271 = vld [vmem:[%s222 + $0x8] sm:$0xff]
        %273 = vset.pattern.permute.xlu0 8
        %274 = vperm.xlu0 %273, %v268
        %v275 = vpop.permute.xlu0 %274
        %278 = vset.pattern.permute.xlu0 8
        %279 = vperm.xlu0 %278, %v269
        %v280 = vpop.permute.xlu0 %279
        %vm282 = vcmask 64512
        %v283 = vsel %vm282, %v268, 0
        %v285 = vsel %vm282, %v269, 0
        %287 = vmatprep.subr.mxu0 %v271
        %288 = vmatpush1.msra.mxu0 %v270
        %289 = vmatprep.subr.mxu0 0.0
        %290 = vmatpush1.msra.mxu0 0.0
        %291 = vmatprep.subr.mxu0 0.0
        %292 = vmatpush1.msra.mxu0 0.0
        %293 = vmatprep.subr.mxu0 0.0
        %294 = vmatpush1.msra.mxu0 0.0
        %295 = vmatprep.subr.mxu0 0.0
        %296 = vmatpush1.msra.mxu0 0.0
        %297 = vmatprep.subr.mxu0 0.0
        %298 = vmatpush1.msra.mxu0 0.0
        %299 = vmatprep.subr.mxu0 0.0
        %300 = vmatpush1.msra.mxu0 0.0
        %301 = vmatprep.subr.mxu0 0.0
        %302 = vmatpush1.msra.mxu0 0.0
        %303 = vmatprep.subr.mxu0 0.0
        %304 = vmatpush1.msra.mxu0 0.0
        %305 = vmatprep.subr.mxu0 0.0
        %306 = vmatpush1.msra.mxu0 0.0
        %307 = vmatprep.subr.mxu0 0.0
        %308 = vmatpush1.msra.mxu0 0.0
        %309 = vmatprep.subr.mxu0 0.0
        %310 = vmatpush1.msra.mxu0 0.0
        %311 = vmatprep.subr.mxu0 0.0
        %312 = vmatpush1.msra.mxu0 0.0
        %313 = vmatprep.subr.mxu0 0.0
        %314 = vmatpush1.msra.mxu0 0.0
        %315 = vmatprep.subr.mxu0 0.0
        %316 = vmatpush1.msra.mxu0 0.0
        %317 = vmatprep.subr.mxu0 0.0
        %318 = vmatpush1.msra.mxu0 0.0
        %319 = vmatprep.subr.mxu0 0.0
        %320 = vmatpush1.msra.mxu0 0.0
        %321 = vmatprep.subr.mxu0 0.0
        %322 = vmatpush1.msra.mxu0 0.0
        %323 = vmatprep.subr.mxu0 0.0
        %324 = vmatpush1.msra.mxu0 0.0
        %325 = vmatprep.subr.mxu0 0.0
        %326 = vmatpush1.msra.mxu0 0.0
        %327 = vmatprep.subr.mxu0 0.0
        %328 = vmatpush1.msra.mxu0 0.0
        %329 = vmatprep.subr.mxu0 0.0
        %330 = vmatpush1.msra.mxu0 0.0
        %331 = vmatprep.subr.mxu0 0.0
        %332 = vmatpush1.msra.mxu0 0.0
        %333 = vmatprep.subr.mxu0 0.0
        %334 = vmatpush1.msra.mxu0 0.0
        %335 = vmatprep.subr.mxu0 0.0
        %336 = vmatpush1.msra.mxu0 0.0
        %337 = vmatprep.subr.mxu0 0.0
        %338 = vmatpush1.msra.mxu0 0.0
        %339 = vmatprep.subr.mxu0 0.0
        %340 = vmatpush1.msra.mxu0 0.0
        %341 = vmatprep.subr.mxu0 0.0
        %342 = vmatpush1.msra.mxu0 0.0
        %343 = vmatprep.subr.mxu0 0.0
        %344 = vmatpush1.msra.mxu0 0.0
        %345 = vmatprep.subr.mxu0 0.0
        %346 = vmatpush1.msra.mxu0 0.0
        %347 = vmatprep.subr.mxu0 0.0
        %348 = vmatpush1.msra.mxu0 0.0
        %349 = vmatprep.subr.mxu0 0.0
        %350 = vmatpush1.msra.mxu0 0.0
        %351 = vmatprep.mubr.f32.mxu0 0.0
        %352 = vmatmul.mubr.f32.gmra.mrb[0].mxu0 %v283
        %v353 = vpop.f32.mrb[0].mxu0
        %v354 = vadd.f32 %v275, %v353
        %v355 = vpop.f32.mrb[0].mxu0
        %v356 = vadd.f32 %v275, %v355
        %357 = vmatprep.mubr.f32.mxu0 0.0
        %358 = vmatmul.mubr.f32.gmra.mrb[0].mxu0 %v285
        %v359 = vpop.f32.mrb[0].mxu0
        %v360 = vadd.f32 %v280, %v359
        %v361 = vpop.f32.mrb[0].mxu0
        %v362 = vadd.f32 %v280, %v361
        %363 = vdwg.mxu0
        %v364 = vmax.f32 %v354, 0.0
        %v365 = vmax.f32 %v356, 0.0
        %v366 = vmax.f32 %v360, 0.0
        %v367 = vmax.f32 %v362, 0.0
        %v368 = vld [vmem:[%s231] sm:$0xff]
        %v369 = vld [vmem:[%s231 + $0x8] sm:$0xff]
        %371 = vset.pattern.permute.xlu0 16
        %372 = vperm.xlu0 %371, %v368
        %v373 = vpop.permute.xlu0 %372
        %376 = vset.pattern.permute.xlu0 16
        %377 = vperm.xlu0 %376, %v369
        %v378 = vpop.permute.xlu0 %377
        %vm380 = vcmask 130048
        %v381 = vsel %vm380, %v368, 0
        %v383 = vsel %vm380, %v369, 0
        %385 = vmatprep.subr.mxu0 %v365
        %386 = vmatpush1.msra.mxu0 %v364
        %387 = vmatprep.subr.mxu0 %v367
        %388 = vmatpush1.msra.mxu0 %v366
        %389 = vmatprep.subr.mxu0 0.0
        %390 = vmatpush1.msra.mxu0 0.0
        %391 = vmatprep.subr.mxu0 0.0
        %392 = vmatpush1.msra.mxu0 0.0
        %393 = vmatprep.subr.mxu0 0.0
        %394 = vmatpush1.msra.mxu0 0.0
        %395 = vmatprep.subr.mxu0 0.0
        %396 = vmatpush1.msra.mxu0 0.0
        %397 = vmatprep.subr.mxu0 0.0
        %398 = vmatpush1.msra.mxu0 0.0
        %399 = vmatprep.subr.mxu0 0.0
        %400 = vmatpush1.msra.mxu0 0.0
        %401 = vmatprep.subr.mxu0 0.0
        %402 = vmatpush1.msra.mxu0 0.0
        %403 = vmatprep.subr.mxu0 0.0
        %404 = vmatpush1.msra.mxu0 0.0
        %405 = vmatprep.subr.mxu0 0.0
        %406 = vmatpush1.msra.mxu0 0.0
        %407 = vmatprep.subr.mxu0 0.0
        %408 = vmatpush1.msra.mxu0 0.0
        %409 = vmatprep.subr.mxu0 0.0
        %410 = vmatpush1.msra.mxu0 0.0
        %411 = vmatprep.subr.mxu0 0.0
        %412 = vmatpush1.msra.mxu0 0.0
        %413 = vmatprep.subr.mxu0 0.0
        %414 = vmatpush1.msra.mxu0 0.0
        %415 = vmatprep.subr.mxu0 0.0
        %416 = vmatpush1.msra.mxu0 0.0
        %417 = vmatprep.subr.mxu0 0.0
        %418 = vmatpush1.msra.mxu0 0.0
        %419 = vmatprep.subr.mxu0 0.0
        %420 = vmatpush1.msra.mxu0 0.0
        %421 = vmatprep.subr.mxu0 0.0
        %422 = vmatpush1.msra.mxu0 0.0
        %423 = vmatprep.subr.mxu0 0.0
        %424 = vmatpush1.msra.mxu0 0.0
        %425 = vmatprep.subr.mxu0 0.0
        %426 = vmatpush1.msra.mxu0 0.0
        %427 = vmatprep.subr.mxu0 0.0
        %428 = vmatpush1.msra.mxu0 0.0
        %429 = vmatprep.subr.mxu0 0.0
        %430 = vmatpush1.msra.mxu0 0.0
        %431 = vmatprep.subr.mxu0 0.0
        %432 = vmatpush1.msra.mxu0 0.0
        %433 = vmatprep.subr.mxu0 0.0
        %434 = vmatpush1.msra.mxu0 0.0
        %435 = vmatprep.subr.mxu0 0.0
        %436 = vmatpush1.msra.mxu0 0.0
        %437 = vmatprep.subr.mxu0 0.0
        %438 = vmatpush1.msra.mxu0 0.0
        %439 = vmatprep.subr.mxu0 0.0
        %440 = vmatpush1.msra.mxu0 0.0
        %441 = vmatprep.subr.mxu0 0.0
        %442 = vmatpush1.msra.mxu0 0.0
        %443 = vmatprep.subr.mxu0 0.0
        %444 = vmatpush1.msra.mxu0 0.0
        %445 = vmatprep.subr.mxu0 0.0
        %446 = vmatpush1.msra.mxu0 0.0
        %447 = vmatprep.subr.mxu0 0.0
        %448 = vmatpush1.msra.mxu0 0.0
        %449 = vmatprep.mubr.f32.mxu0 0.0
        %450 = vmatmul.mubr.f32.gmra.mrb[0].mxu0 %v381
        %v451 = vpop.f32.mrb[0].mxu0
        %v452 = vadd.f32 %v373, %v451
        %v453 = vpop.f32.mrb[0].mxu0
        %v454 = vadd.f32 %v373, %v453
        %455 = vmatprep.mubr.f32.mxu0 0.0
        %456 = vmatmul.mubr.f32.gmra.mrb[0].mxu0 %v383
        %v457 = vpop.f32.mrb[0].mxu0
        %v458 = vadd.f32 %v378, %v457
        %v459 = vpop.f32.mrb[0].mxu0
        %v460 = vadd.f32 %v378, %v459
        %461 = vdwg.mxu0
        %462 = vst [vmem:[%s262] sm:$0xff] %v452
        %463 = vst [vmem:[%s262 + $0x8] sm:$0xff] %v454
        %464 = vst [vmem:[%s262 + $0x10] sm:$0xff] %v458
        %465 = vst [vmem:[%s262 + $0x18] sm:$0xff] %v460
        %s466 = scalar_lea.vmem %s222, 16 [#allocation2]
        %v467 = vld [vmem:[%s466] sm:$0xff]
        %v468 = vld [vmem:[%s466 + $0x8] sm:$0xff]
        %469 = vmatprep.subr.mxu0 %v468
        %470 = vmatpush1.msra.mxu0 %v467
        %471 = vmatprep.subr.mxu0 0.0
        %472 = vmatpush1.msra.mxu0 0.0
        %473 = vmatprep.subr.mxu0 0.0
        %474 = vmatpush1.msra.mxu0 0.0
        %475 = vmatprep.subr.mxu0 0.0
        %476 = vmatpush1.msra.mxu0 0.0
        %477 = vmatprep.subr.mxu0 0.0
        %478 = vmatpush1.msra.mxu0 0.0
        %479 = vmatprep.subr.mxu0 0.0
        %480 = vmatpush1.msra.mxu0 0.0
        %481 = vmatprep.subr.mxu0 0.0
        %482 = vmatpush1.msra.mxu0 0.0
        %483 = vmatprep.subr.mxu0 0.0
        %484 = vmatpush1.msra.mxu0 0.0
        %485 = vmatprep.subr.mxu0 0.0
        %486 = vmatpush1.msra.mxu0 0.0
        %487 = vmatprep.subr.mxu0 0.0
        %488 = vmatpush1.msra.mxu0 0.0
        %489 = vmatprep.subr.mxu0 0.0
        %490 = vmatpush1.msra.mxu0 0.0
        %491 = vmatprep.subr.mxu0 0.0
        %492 = vmatpush1.msra.mxu0 0.0
        %493 = vmatprep.subr.mxu0 0.0
        %494 = vmatpush1.msra.mxu0 0.0
        %495 = vmatprep.subr.mxu0 0.0
        %496 = vmatpush1.msra.mxu0 0.0
        %497 = vmatprep.subr.mxu0 0.0
        %498 = vmatpush1.msra.mxu0 0.0
        %499 = vmatprep.subr.mxu0 0.0
        %500 = vmatpush1.msra.mxu0 0.0
        %501 = vmatprep.subr.mxu0 0.0
        %502 = vmatpush1.msra.mxu0 0.0
        %503 = vmatprep.subr.mxu0 0.0
        %504 = vmatpush1.msra.mxu0 0.0
        %505 = vmatprep.subr.mxu0 0.0
        %506 = vmatpush1.msra.mxu0 0.0
        %507 = vmatprep.subr.mxu0 0.0
        %508 = vmatpush1.msra.mxu0 0.0
        %509 = vmatprep.subr.mxu0 0.0
        %510 = vmatpush1.msra.mxu0 0.0
        %511 = vmatprep.subr.mxu0 0.0
        %512 = vmatpush1.msra.mxu0 0.0
        %513 = vmatprep.subr.mxu0 0.0
        %514 = vmatpush1.msra.mxu0 0.0
        %515 = vmatprep.subr.mxu0 0.0
        %516 = vmatpush1.msra.mxu0 0.0
        %517 = vmatprep.subr.mxu0 0.0
        %518 = vmatpush1.msra.mxu0 0.0
        %519 = vmatprep.subr.mxu0 0.0
        %520 = vmatpush1.msra.mxu0 0.0
        %521 = vmatprep.subr.mxu0 0.0
        %522 = vmatpush1.msra.mxu0 0.0
        %523 = vmatprep.subr.mxu0 0.0
        %524 = vmatpush1.msra.mxu0 0.0
        %525 = vmatprep.subr.mxu0 0.0
        %526 = vmatpush1.msra.mxu0 0.0
        %527 = vmatprep.subr.mxu0 0.0
        %528 = vmatpush1.msra.mxu0 0.0
        %529 = vmatprep.subr.mxu0 0.0
        %530 = vmatpush1.msra.mxu0 0.0
        %531 = vmatprep.subr.mxu0 0.0
        %532 = vmatpush1.msra.mxu0 0.0
        %533 = vmatprep.mubr.f32.mxu0 0.0
        %534 = vmatmul.mubr.f32.gmra.mrb[0].mxu0 %v283
        %v535 = vpop.f32.mrb[0].mxu0
        %v536 = vadd.f32 %v275, %v535
        %v537 = vpop.f32.mrb[0].mxu0
        %v538 = vadd.f32 %v275, %v537
        %539 = vmatprep.mubr.f32.mxu0 0.0
        %540 = vmatmul.mubr.f32.gmra.mrb[0].mxu0 %v285
        %v541 = vpop.f32.mrb[0].mxu0
        %v542 = vadd.f32 %v280, %v541
        %v543 = vpop.f32.mrb[0].mxu0
        %v544 = vadd.f32 %v280, %v543
        %545 = vdwg.mxu0
        %v546 = vmax.f32 %v536, 0.0
        %v547 = vmax.f32 %v538, 0.0
        %v548 = vmax.f32 %v542, 0.0
        %v549 = vmax.f32 %v544, 0.0
        %s550 = scalar_lea.vmem %s231, 16 [#allocation5]
        %v551 = vld [vmem:[%s550] sm:$0xff]
        %v552 = vld [vmem:[%s550 + $0x8] sm:$0xff]
        %554 = vset.pattern.permute.xlu0 16
        %555 = vperm.xlu0 %554, %v551
        %v556 = vpop.permute.xlu0 %555
        %559 = vset.pattern.permute.xlu0 16
        %560 = vperm.xlu0 %559, %v552
        %v561 = vpop.permute.xlu0 %560
        %v563 = vsel %vm380, %v551, 0
        %v565 = vsel %vm380, %v552, 0
        %567 = vmatprep.subr.mxu0 %v547
        %568 = vmatpush1.msra.mxu0 %v546
        %569 = vmatprep.subr.mxu0 %v549
        %570 = vmatpush1.msra.mxu0 %v548
        %571 = vmatprep.subr.mxu0 0.0
        %572 = vmatpush1.msra.mxu0 0.0
        %573 = vmatprep.subr.mxu0 0.0
        %574 = vmatpush1.msra.mxu0 0.0
        %575 = vmatprep.subr.mxu0 0.0
        %576 = vmatpush1.msra.mxu0 0.0
        %577 = vmatprep.subr.mxu0 0.0
        %578 = vmatpush1.msra.mxu0 0.0
        %579 = vmatprep.subr.mxu0 0.0
        %580 = vmatpush1.msra.mxu0 0.0
        %581 = vmatprep.subr.mxu0 0.0
        %582 = vmatpush1.msra.mxu0 0.0
        %583 = vmatprep.subr.mxu0 0.0
        %584 = vmatpush1.msra.mxu0 0.0
        %585 = vmatprep.subr.mxu0 0.0
        %586 = vmatpush1.msra.mxu0 0.0
        %587 = vmatprep.subr.mxu0 0.0
        %588 = vmatpush1.msra.mxu0 0.0
        %589 = vmatprep.subr.mxu0 0.0
        %590 = vmatpush1.msra.mxu0 0.0
        %591 = vmatprep.subr.mxu0 0.0
        %592 = vmatpush1.msra.mxu0 0.0
        %593 = vmatprep.subr.mxu0 0.0
        %594 = vmatpush1.msra.mxu0 0.0
        %595 = vmatprep.subr.mxu0 0.0
        %596 = vmatpush1.msra.mxu0 0.0
        %597 = vmatprep.subr.mxu0 0.0
        %598 = vmatpush1.msra.mxu0 0.0
        %599 = vmatprep.subr.mxu0 0.0
        %600 = vmatpush1.msra.mxu0 0.0
        %601 = vmatprep.subr.mxu0 0.0
        %602 = vmatpush1.msra.mxu0 0.0
        %603 = vmatprep.subr.mxu0 0.0
        %604 = vmatpush1.msra.mxu0 0.0
        %605 = vmatprep.subr.mxu0 0.0
        %606 = vmatpush1.msra.mxu0 0.0
        %607 = vmatprep.subr.mxu0 0.0
        %608 = vmatpush1.msra.mxu0 0.0
        %609 = vmatprep.subr.mxu0 0.0
        %610 = vmatpush1.msra.mxu0 0.0
        %611 = vmatprep.subr.mxu0 0.0
        %612 = vmatpush1.msra.mxu0 0.0
        %613 = vmatprep.subr.mxu0 0.0
        %614 = vmatpush1.msra.mxu0 0.0
        %615 = vmatprep.subr.mxu0 0.0
        %616 = vmatpush1.msra.mxu0 0.0
        %617 = vmatprep.subr.mxu0 0.0
        %618 = vmatpush1.msra.mxu0 0.0
        %619 = vmatprep.subr.mxu0 0.0
        %620 = vmatpush1.msra.mxu0 0.0
        %621 = vmatprep.subr.mxu0 0.0
        %622 = vmatpush1.msra.mxu0 0.0
        %623 = vmatprep.subr.mxu0 0.0
        %624 = vmatpush1.msra.mxu0 0.0
        %625 = vmatprep.subr.mxu0 0.0
        %626 = vmatpush1.msra.mxu0 0.0
        %627 = vmatprep.subr.mxu0 0.0
        %628 = vmatpush1.msra.mxu0 0.0
        %629 = vmatprep.subr.mxu0 0.0
        %630 = vmatpush1.msra.mxu0 0.0
        %631 = vmatprep.mubr.f32.mxu0 0.0
        %632 = vmatmul.mubr.f32.gmra.mrb[0].mxu0 %v563
        %v633 = vpop.f32.mrb[0].mxu0
        %v634 = vadd.f32 %v556, %v633
        %v635 = vpop.f32.mrb[0].mxu0
        %v636 = vadd.f32 %v556, %v635
        %637 = vmatprep.mubr.f32.mxu0 0.0
        %638 = vmatmul.mubr.f32.gmra.mrb[0].mxu0 %v565
        %v639 = vpop.f32.mrb[0].mxu0
        %v640 = vadd.f32 %v561, %v639
        %v641 = vpop.f32.mrb[0].mxu0
        %v642 = vadd.f32 %v561, %v641
        %643 = vdwg.mxu0
        %s644 = scalar_lea.vmem %s262, 32 [#allocation8]
        %645 = vst [vmem:[%s644] sm:$0xff] %v634
        %646 = vst [vmem:[%s644 + $0x8] sm:$0xff] %v636
        %647 = vst [vmem:[%s644 + $0x10] sm:$0xff] %v640
        %648 = vst [vmem:[%s644 + $0x18] sm:$0xff] %v642
        %s649 = scalar_lea.vmem %s222, 32 [#allocation2]
        %v650 = vld [vmem:[%s649] sm:$0xff]
        %v651 = vld [vmem:[%s649 + $0x8] sm:$0xff]
        %652 = vmatprep.subr.mxu0 %v651
        %653 = vmatpush1.msra.mxu0 %v650
        %654 = vmatprep.subr.mxu0 0.0
        %655 = vmatpush1.msra.mxu0 0.0
        %656 = vmatprep.subr.mxu0 0.0
        %657 = vmatpush1.msra.mxu0 0.0
        %658 = vmatprep.subr.mxu0 0.0
        %659 = vmatpush1.msra.mxu0 0.0
        %660 = vmatprep.subr.mxu0 0.0
        %661 = vmatpush1.msra.mxu0 0.0
        %662 = vmatprep.subr.mxu0 0.0
        %663 = vmatpush1.msra.mxu0 0.0
        %664 = vmatprep.subr.mxu0 0.0
        %665 = vmatpush1.msra.mxu0 0.0
        %666 = vmatprep.subr.mxu0 0.0
        %667 = vmatpush1.msra.mxu0 0.0
        %668 = vmatprep.subr.mxu0 0.0
        %669 = vmatpush1.msra.mxu0 0.0
        %670 = vmatprep.subr.mxu0 0.0
        %671 = vmatpush1.msra.mxu0 0.0
        %672 = vmatprep.subr.mxu0 0.0
        %673 = vmatpush1.msra.mxu0 0.0
        %674 = vmatprep.subr.mxu0 0.0
        %675 = vmatpush1.msra.mxu0 0.0
        %676 = vmatprep.subr.mxu0 0.0
        %677 = vmatpush1.msra.mxu0 0.0
        %678 = vmatprep.subr.mxu0 0.0
        %679 = vmatpush1.msra.mxu0 0.0
        %680 = vmatprep.subr.mxu0 0.0
        %681 = vmatpush1.msra.mxu0 0.0
        %682 = vmatprep.subr.mxu0 0.0
        %683 = vmatpush1.msra.mxu0 0.0
        %684 = vmatprep.subr.mxu0 0.0
        %685 = vmatpush1.msra.mxu0 0.0
        %686 = vmatprep.subr.mxu0 0.0
        %687 = vmatpush1.msra.mxu0 0.0
        %688 = vmatprep.subr.mxu0 0.0
        %689 = vmatpush1.msra.mxu0 0.0
        %690 = vmatprep.subr.mxu0 0.0
        %691 = vmatpush1.msra.mxu0 0.0
        %692 = vmatprep.subr.mxu0 0.0
        %693 = vmatpush1.msra.mxu0 0.0
        %694 = vmatprep.subr.mxu0 0.0
        %695 = vmatpush1.msra.mxu0 0.0
        %696 = vmatprep.subr.mxu0 0.0
        %697 = vmatpush1.msra.mxu0 0.0
        %698 = vmatprep.subr.mxu0 0.0
        %699 = vmatpush1.msra.mxu0 0.0
        %700 = vmatprep.subr.mxu0 0.0
        %701 = vmatpush1.msra.mxu0 0.0
        %702 = vmatprep.subr.mxu0 0.0
        %703 = vmatpush1.msra.mxu0 0.0
        %704 = vmatprep.subr.mxu0 0.0
        %705 = vmatpush1.msra.mxu0 0.0
        %706 = vmatprep.subr.mxu0 0.0
        %707 = vmatpush1.msra.mxu0 0.0
        %708 = vmatprep.subr.mxu0 0.0
        %709 = vmatpush1.msra.mxu0 0.0
        %710 = vmatprep.subr.mxu0 0.0
        %711 = vmatpush1.msra.mxu0 0.0
        %712 = vmatprep.subr.mxu0 0.0
        %713 = vmatpush1.msra.mxu0 0.0
        %714 = vmatprep.subr.mxu0 0.0
        %715 = vmatpush1.msra.mxu0 0.0
        %716 = vmatprep.mubr.f32.mxu0 0.0
        %717 = vmatmul.mubr.f32.gmra.mrb[0].mxu0 %v283
        %v718 = vpop.f32.mrb[0].mxu0
        %v719 = vadd.f32 %v275, %v718
        %v720 = vpop.f32.mrb[0].mxu0
        %v721 = vadd.f32 %v275, %v720
        %722 = vmatprep.mubr.f32.mxu0 0.0
        %723 = vmatmul.mubr.f32.gmra.mrb[0].mxu0 %v285
        %v724 = vpop.f32.mrb[0].mxu0
        %v725 = vadd.f32 %v280, %v724
        %v726 = vpop.f32.mrb[0].mxu0
        %v727 = vadd.f32 %v280, %v726
        %728 = vdwg.mxu0
        %v729 = vmax.f32 %v719, 0.0
        %v730 = vmax.f32 %v721, 0.0
        %v731 = vmax.f32 %v725, 0.0
        %v732 = vmax.f32 %v727, 0.0
        %s733 = scalar_lea.vmem %s231, 32 [#allocation5]
        %v734 = vld [vmem:[%s733] sm:$0xff]
        %v735 = vld [vmem:[%s733 + $0x8] sm:$0xff]
        %737 = vset.pattern.permute.xlu0 16
        %738 = vperm.xlu0 %737, %v734
        %v739 = vpop.permute.xlu0 %738
        %742 = vset.pattern.permute.xlu0 16
        %743 = vperm.xlu0 %742, %v735
        %v744 = vpop.permute.xlu0 %743
        %v746 = vsel %vm380, %v734, 0
        %v748 = vsel %vm380, %v735, 0
        %750 = vmatprep.subr.mxu0 %v730
        %751 = vmatpush1.msra.mxu0 %v729
        %752 = vmatprep.subr.mxu0 %v732
        %753 = vmatpush1.msra.mxu0 %v731
        %754 = vmatprep.subr.mxu0 0.0
        %755 = vmatpush1.msra.mxu0 0.0
        %756 = vmatprep.subr.mxu0 0.0
        %757 = vmatpush1.msra.mxu0 0.0
        %758 = vmatprep.subr.mxu0 0.0
        %759 = vmatpush1.msra.mxu0 0.0
        %760 = vmatprep.subr.mxu0 0.0
        %761 = vmatpush1.msra.mxu0 0.0
        %762 = vmatprep.subr.mxu0 0.0
        %763 = vmatpush1.msra.mxu0 0.0
        %764 = vmatprep.subr.mxu0 0.0
        %765 = vmatpush1.msra.mxu0 0.0
        %766 = vmatprep.subr.mxu0 0.0
        %767 = vmatpush1.msra.mxu0 0.0
        %768 = vmatprep.subr.mxu0 0.0
        %769 = vmatpush1.msra.mxu0 0.0
        %770 = vmatprep.subr.mxu0 0.0
        %771 = vmatpush1.msra.mxu0 0.0
        %772 = vmatprep.subr.mxu0 0.0
        %773 = vmatpush1.msra.mxu0 0.0
        %774 = vmatprep.subr.mxu0 0.0
        %775 = vmatpush1.msra.mxu0 0.0
        %776 = vmatprep.subr.mxu0 0.0
        %777 = vmatpush1.msra.mxu0 0.0
        %778 = vmatprep.subr.mxu0 0.0
        %779 = vmatpush1.msra.mxu0 0.0
        %780 = vmatprep.subr.mxu0 0.0
        %781 = vmatpush1.msra.mxu0 0.0
        %782 = vmatprep.subr.mxu0 0.0
        %783 = vmatpush1.msra.mxu0 0.0
        %784 = vmatprep.subr.mxu0 0.0
        %785 = vmatpush1.msra.mxu0 0.0
        %786 = vmatprep.subr.mxu0 0.0
        %787 = vmatpush1.msra.mxu0 0.0
        %788 = vmatprep.subr.mxu0 0.0
        %789 = vmatpush1.msra.mxu0 0.0
        %790 = vmatprep.subr.mxu0 0.0
        %791 = vmatpush1.msra.mxu0 0.0
        %792 = vmatprep.subr.mxu0 0.0
        %793 = vmatpush1.msra.mxu0 0.0
        %794 = vmatprep.subr.mxu0 0.0
        %795 = vmatpush1.msra.mxu0 0.0
        %796 = vmatprep.subr.mxu0 0.0
        %797 = vmatpush1.msra.mxu0 0.0
        %798 = vmatprep.subr.mxu0 0.0
        %799 = vmatpush1.msra.mxu0 0.0
        %800 = vmatprep.subr.mxu0 0.0
        %801 = vmatpush1.msra.mxu0 0.0
        %802 = vmatprep.subr.mxu0 0.0
        %803 = vmatpush1.msra.mxu0 0.0
        %804 = vmatprep.subr.mxu0 0.0
        %805 = vmatpush1.msra.mxu0 0.0
        %806 = vmatprep.subr.mxu0 0.0
        %807 = vmatpush1.msra.mxu0 0.0
        %808 = vmatprep.subr.mxu0 0.0
        %809 = vmatpush1.msra.mxu0 0.0
        %810 = vmatprep.subr.mxu0 0.0
        %811 = vmatpush1.msra.mxu0 0.0
        %812 = vmatprep.subr.mxu0 0.0
        %813 = vmatpush1.msra.mxu0 0.0
        %814 = vmatprep.mubr.f32.mxu0 0.0
        %815 = vmatmul.mubr.f32.gmra.mrb[0].mxu0 %v746
        %v816 = vpop.f32.mrb[0].mxu0
        %v817 = vadd.f32 %v739, %v816
        %v818 = vpop.f32.mrb[0].mxu0
        %v819 = vadd.f32 %v739, %v818
        %820 = vmatprep.mubr.f32.mxu0 0.0
        %821 = vmatmul.mubr.f32.gmra.mrb[0].mxu0 %v748
        %v822 = vpop.f32.mrb[0].mxu0
        %v823 = vadd.f32 %v744, %v822
        %v824 = vpop.f32.mrb[0].mxu0
        %v825 = vadd.f32 %v744, %v824
        %826 = vdwg.mxu0
        %s827 = scalar_lea.vmem %s262, 64 [#allocation8]
        %828 = vst [vmem:[%s827] sm:$0xff] %v817
        %829 = vst [vmem:[%s827 + $0x8] sm:$0xff] %v819
        %830 = vst [vmem:[%s827 + $0x10] sm:$0xff] %v823
        %831 = vst [vmem:[%s827 + $0x18] sm:$0xff] %v825
        %s832 = scalar_lea.vmem %s222, 48 [#allocation2]
        %v833 = vld [vmem:[%s832] sm:$0xff]
        %v834 = vld [vmem:[%s832 + $0x8] sm:$0xff]
        %835 = vmatprep.subr.mxu0 %v834
        %836 = vmatpush1.msra.mxu0 %v833
        %837 = vmatprep.subr.mxu0 0.0
        %838 = vmatpush1.msra.mxu0 0.0
        %839 = vmatprep.subr.mxu0 0.0
        %840 = vmatpush1.msra.mxu0 0.0
        %841 = vmatprep.subr.mxu0 0.0
        %842 = vmatpush1.msra.mxu0 0.0
        %843 = vmatprep.subr.mxu0 0.0
        %844 = vmatpush1.msra.mxu0 0.0
        %845 = vmatprep.subr.mxu0 0.0
        %846 = vmatpush1.msra.mxu0 0.0
        %847 = vmatprep.subr.mxu0 0.0
        %848 = vmatpush1.msra.mxu0 0.0
        %849 = vmatprep.subr.mxu0 0.0
        %850 = vmatpush1.msra.mxu0 0.0
        %851 = vmatprep.subr.mxu0 0.0
        %852 = vmatpush1.msra.mxu0 0.0
        %853 = vmatprep.subr.mxu0 0.0
        %854 = vmatpush1.msra.mxu0 0.0
        %855 = vmatprep.subr.mxu0 0.0
        %856 = vmatpush1.msra.mxu0 0.0
        %857 = vmatprep.subr.mxu0 0.0
        %858 = vmatpush1.msra.mxu0 0.0
        %859 = vmatprep.subr.mxu0 0.0
        %860 = vmatpush1.msra.mxu0 0.0
        %861 = vmatprep.subr.mxu0 0.0
        %862 = vmatpush1.msra.mxu0 0.0
        %863 = vmatprep.subr.mxu0 0.0
        %864 = vmatpush1.msra.mxu0 0.0
        %865 = vmatprep.subr.mxu0 0.0
        %866 = vmatpush1.msra.mxu0 0.0
        %867 = vmatprep.subr.mxu0 0.0
        %868 = vmatpush1.msra.mxu0 0.0
        %869 = vmatprep.subr.mxu0 0.0
        %870 = vmatpush1.msra.mxu0 0.0
        %871 = vmatprep.subr.mxu0 0.0
        %872 = vmatpush1.msra.mxu0 0.0
        %873 = vmatprep.subr.mxu0 0.0
        %874 = vmatpush1.msra.mxu0 0.0
        %875 = vmatprep.subr.mxu0 0.0
        %876 = vmatpush1.msra.mxu0 0.0
        %877 = vmatprep.subr.mxu0 0.0
        %878 = vmatpush1.msra.mxu0 0.0
        %879 = vmatprep.subr.mxu0 0.0
        %880 = vmatpush1.msra.mxu0 0.0
        %881 = vmatprep.subr.mxu0 0.0
        %882 = vmatpush1.msra.mxu0 0.0
        %883 = vmatprep.subr.mxu0 0.0
        %884 = vmatpush1.msra.mxu0 0.0
        %885 = vmatprep.subr.mxu0 0.0
        %886 = vmatpush1.msra.mxu0 0.0
        %887 = vmatprep.subr.mxu0 0.0
        %888 = vmatpush1.msra.mxu0 0.0
        %889 = vmatprep.subr.mxu0 0.0
        %890 = vmatpush1.msra.mxu0 0.0
        %891 = vmatprep.subr.mxu0 0.0
        %892 = vmatpush1.msra.mxu0 0.0
        %893 = vmatprep.subr.mxu0 0.0
        %894 = vmatpush1.msra.mxu0 0.0
        %895 = vmatprep.subr.mxu0 0.0
        %896 = vmatpush1.msra.mxu0 0.0
        %897 = vmatprep.subr.mxu0 0.0
        %898 = vmatpush1.msra.mxu0 0.0
        %899 = vmatprep.mubr.f32.mxu0 0.0
        %900 = vmatmul.mubr.f32.gmra.mrb[0].mxu0 %v283
        %v901 = vpop.f32.mrb[0].mxu0
        %v902 = vadd.f32 %v275, %v901
        %v903 = vpop.f32.mrb[0].mxu0
        %v904 = vadd.f32 %v275, %v903
        %905 = vmatprep.mubr.f32.mxu0 0.0
        %906 = vmatmul.mubr.f32.gmra.mrb[0].mxu0 %v285
        %v907 = vpop.f32.mrb[0].mxu0
        %v908 = vadd.f32 %v280, %v907
        %v909 = vpop.f32.mrb[0].mxu0
        %v910 = vadd.f32 %v280, %v909
        %911 = vdwg.mxu0
        %v912 = vmax.f32 %v902, 0.0
        %v913 = vmax.f32 %v904, 0.0
        %v914 = vmax.f32 %v908, 0.0
        %v915 = vmax.f32 %v910, 0.0
        %s916 = scalar_lea.vmem %s231, 48 [#allocation5]
        %v917 = vld [vmem:[%s916] sm:$0xff]
        %v918 = vld [vmem:[%s916 + $0x8] sm:$0xff]
        %920 = vset.pattern.permute.xlu0 16
        %921 = vperm.xlu0 %920, %v917
        %v922 = vpop.permute.xlu0 %921
        %925 = vset.pattern.permute.xlu0 16
        %926 = vperm.xlu0 %925, %v918
        %v927 = vpop.permute.xlu0 %926
        %v929 = vsel %vm380, %v917, 0
        %v931 = vsel %vm380, %v918, 0
        %933 = vmatprep.subr.mxu0 %v913
        %934 = vmatpush1.msra.mxu0 %v912
        %935 = vmatprep.subr.mxu0 %v915
        %936 = vmatpush1.msra.mxu0 %v914
        %937 = vmatprep.subr.mxu0 0.0
        %938 = vmatpush1.msra.mxu0 0.0
        %939 = vmatprep.subr.mxu0 0.0
        %940 = vmatpush1.msra.mxu0 0.0
        %941 = vmatprep.subr.mxu0 0.0
        %942 = vmatpush1.msra.mxu0 0.0
        %943 = vmatprep.subr.mxu0 0.0
        %944 = vmatpush1.msra.mxu0 0.0
        %945 = vmatprep.subr.mxu0 0.0
        %946 = vmatpush1.msra.mxu0 0.0
        %947 = vmatprep.subr.mxu0 0.0
        %948 = vmatpush1.msra.mxu0 0.0
        %949 = vmatprep.subr.mxu0 0.0
        %950 = vmatpush1.msra.mxu0 0.0
        %951 = vmatprep.subr.mxu0 0.0
        %952 = vmatpush1.msra.mxu0 0.0
        %953 = vmatprep.subr.mxu0 0.0
        %954 = vmatpush1.msra.mxu0 0.0
        %955 = vmatprep.subr.mxu0 0.0
        %956 = vmatpush1.msra.mxu0 0.0
        %957 = vmatprep.subr.mxu0 0.0
        %958 = vmatpush1.msra.mxu0 0.0
        %959 = vmatprep.subr.mxu0 0.0
        %960 = vmatpush1.msra.mxu0 0.0
        %961 = vmatprep.subr.mxu0 0.0
        %962 = vmatpush1.msra.mxu0 0.0
        %963 = vmatprep.subr.mxu0 0.0
        %964 = vmatpush1.msra.mxu0 0.0
        %965 = vmatprep.subr.mxu0 0.0
        %966 = vmatpush1.msra.mxu0 0.0
        %967 = vmatprep.subr.mxu0 0.0
        %968 = vmatpush1.msra.mxu0 0.0
        %969 = vmatprep.subr.mxu0 0.0
        %970 = vmatpush1.msra.mxu0 0.0
        %971 = vmatprep.subr.mxu0 0.0
        %972 = vmatpush1.msra.mxu0 0.0
        %973 = vmatprep.subr.mxu0 0.0
        %974 = vmatpush1.msra.mxu0 0.0
        %975 = vmatprep.subr.mxu0 0.0
        %976 = vmatpush1.msra.mxu0 0.0
        %977 = vmatprep.subr.mxu0 0.0
        %978 = vmatpush1.msra.mxu0 0.0
        %979 = vmatprep.subr.mxu0 0.0
        %980 = vmatpush1.msra.mxu0 0.0
        %981 = vmatprep.subr.mxu0 0.0
        %982 = vmatpush1.msra.mxu0 0.0
        %983 = vmatprep.subr.mxu0 0.0
        %984 = vmatpush1.msra.mxu0 0.0
        %985 = vmatprep.subr.mxu0 0.0
        %986 = vmatpush1.msra.mxu0 0.0
        %987 = vmatprep.subr.mxu0 0.0
        %988 = vmatpush1.msra.mxu0 0.0
        %989 = vmatprep.subr.mxu0 0.0
        %990 = vmatpush1.msra.mxu0 0.0
        %991 = vmatprep.subr.mxu0 0.0
        %992 = vmatpush1.msra.mxu0 0.0
        %993 = vmatprep.subr.mxu0 0.0
        %994 = vmatpush1.msra.mxu0 0.0
        %995 = vmatprep.subr.mxu0 0.0
        %996 = vmatpush1.msra.mxu0 0.0
        %997 = vmatprep.mubr.f32.mxu0 0.0
        %998 = vmatmul.mubr.f32.gmra.mrb[0].mxu0 %v929
        %v999 = vpop.f32.mrb[0].mxu0
        %v1000 = vadd.f32 %v922, %v999
        %v1001 = vpop.f32.mrb[0].mxu0
        %v1002 = vadd.f32 %v922, %v1001
        %1003 = vmatprep.mubr.f32.mxu0 0.0
        %1004 = vmatmul.mubr.f32.gmra.mrb[0].mxu0 %v931
        %v1005 = vpop.f32.mrb[0].mxu0
        %v1006 = vadd.f32 %v927, %v1005
        %v1007 = vpop.f32.mrb[0].mxu0
        %v1008 = vadd.f32 %v927, %v1007
        %1009 = vdwg.mxu0
        %s1010 = scalar_lea.vmem %s262, 96 [#allocation8]
        %1011 = vst [vmem:[%s1010] sm:$0xff] %v1000
        %1012 = vst [vmem:[%s1010 + $0x8] sm:$0xff] %v1002
        %1013 = vst [vmem:[%s1010 + $0x10] sm:$0xff] %v1006
        %1014 = vst [vmem:[%s1010 + $0x18] sm:$0xff] %v1008
        %s1015 = sand.u32 %s120, 1
        %s1016 = scalar_lea.sflag [#allocation4], %s1015
        %s1017 = sand.u32 %s120, 1
        %s1018 = smul.addr %s1017, 128
        %s1019 = scalar_lea.vmem [#allocation8], %s1018
        // Predicated region
        $region45: #{tpu_custom_call.1} parent=31 // pred_check
          %p1020 = pneg %p130
        $region46: #{tpu_custom_call.1} parent=31 // pred_check_branch
          %1022 = sbr.rel (%p1020) target = $region48
        $region47: #{tpu_custom_call.1} parent=31 // pred_region
          %s1023 = smul.u32 4, %s27
          %s1024 = smul.u32 2, %s28
          %s1026 = ssub.s32 2048, 2048
          %1027 = vsyncadd %s1016, %s1026
          %s1028 = smul.addr %s1023, 4
          %s1029 = sadd.s32 %s1024, %s1028
          %s1030 = smul.addr %s1029, 128
          %s1031 = scalar_lea.hbm %s3, %s1030
          %s1032 = sshll.u32 %s1019, 4
          %s1033 = int_to_ptr.vmem [resolvable:$true] %s1032
          %1038 = dma.vmem_to_hbm [thread:$0]  %s1033, 2048, %s1031, %s1016, 256, 256, 16
        $region48: #{tpu_custom_call.1} parent=31 // pred_fallthru
          _
      $region32: #{tpu_custom_call.1} parent=5 // pred_fallthru
        _
      %p1039 = scmp.le.s32.totalorder 2, %s18
      // Predicated region
      $region49: #{tpu_custom_call.1} parent=5 // pred_check
        %p1040 = pneg %p1039
      $region50: #{tpu_custom_call.1} parent=5 // pred_check_branch
        %1042 = sbr.rel (%p1040) target = $region52
      $region51: #{tpu_custom_call.1} parent=5 // pred_region
        %s1043 = ssub.s32 %s18, 2
        // Predicated region
        $region53: #{tpu_custom_call.1} parent=51 // pred_check
          %p1044 = pneg %p136
        $region54: #{tpu_custom_call.1} parent=51 // pred_check_branch
          %1046 = sbr.rel (%p1044) target = $region56
        $region55: #{tpu_custom_call.1} parent=51 // pred_region
          %s1047 = sand.u32 %s121, 1
          %s1048 = scalar_lea.sflag [#allocation4], %s1047
          %s1049 = sand.u32 %s121, 1
          %s1050 = smul.addr %s1049, 128
          %s1051 = scalar_lea.vmem [#allocation8], %s1050
          %1052 = dma.done %s1048, 2048
        $region56: #{tpu_custom_call.1} parent=51 // pred_fallthru
          _
      $region52: #{tpu_custom_call.1} parent=5 // pred_fallthru
        _
    $region6: #{tpu_custom_call.1} parent=1 // loop_footer
      %s22 = sadd.s32 1, %s18
    $region7: #{tpu_custom_call.1} parent=1 // loop_footer_branch
      %17 = sbr.rel target = $region3
    $region8: #{tpu_custom_call.1} parent=1 // loop_exit
      _
    %1053 = vsyncpa [#allocation3], 1
    %s1054 = scalar_lea.sflag [#allocation3], 1
    %1055 = vsyncpa %s1054, 1
    %1056 = vsyncpa [#allocation6], 1
    %s1057 = scalar_lea.sflag [#allocation6], 1
    %1058 = vsyncpa %s1057, 1
    %1059 = vsyncpa [#allocation4], 1
    %s1060 = scalar_lea.sflag [#allocation4], 1
    %1061 = vsyncpa %s1060, 1

</llo_original>
